<compile_context>
chip_gen: v7x
topology: tpu7x:2x2x1
jax: 0.10.0
libtpu: 0.0.40
codegen_flags: <defaults>
</compile_context>

<pallas_src>
import functools

import jax
import jax.numpy as jnp
import numpy as np
from jax import lax
from jax.experimental import pallas as pl
from jax.experimental.pallas import tpu as pltpu


def _round_up(x, m):
    return ((x + m - 1) // m) * m


def _normalize_coords(coords_f, R, normalize, eps):
    """Shared by wrapper and reference so voxel assignment is bit-identical.

    coords_f: (B, N, 3) float32 -> (norm_coords (B, N, 3), flat_idx (B, N) int32)
    """
    nc = coords_f - jnp.mean(coords_f, axis=1, keepdims=True)
    if normalize:
        denom = jnp.max(jnp.linalg.norm(nc, axis=2, keepdims=True),
                        axis=1, keepdims=True) * 2.0 + eps
        nc = nc / denom + 0.5
    else:
        nc = (nc + 1.0) / 2.0
    nc = jnp.clip(nc * R, 0.0, float(R - 1))
    vox = jnp.round(nc).astype(jnp.int32)
    flat = vox[..., 0] * (R * R) + vox[..., 1] * R + vox[..., 2]
    return nc, flat


def _vmem_estimate(tile_n, sub, c2p, r3_pad):
    """Rough per-grid-step VMEM working set in bytes."""
    feats_io = 2 * c2p * tile_n * 2           # bf16 feature block, double-buffered
    idx_io = 2 * tile_n * 128 * 4             # lane-padded int32 idx block, x2 buffers
    out_io = 2 * c2p * r3_pad * 4             # f32 accumulator/output block
    transient = sub * r3_pad * (4 + 4 + 2)    # lane-iota + compare + bf16 one-hot
    transient += c2p * r3_pad * 4             # matmul f32 result before accumulate
    return feats_io + idx_io + out_io + transient


def _voxel_accum_kernel(idx_ref, feat_ref, o_ref, *, sub, nt_sub, r3_pad):
    """One (batch, split, point-tile) grid step.

    idx_ref : (1, TILE_N, 1) int32  flat voxel index per point (-1 for padded points)
    feat_ref: (1, C2, TILE_N) bf16  channel-major rows = [hi; lo; ones] (f32 input)
                                    or [feat; ones] (bf16 input)
    o_ref   : (1, 1, C2, R3_pad) f32  raw sums+counts, resident across the point axis
    """
    @pl.when(pl.program_id(2) == 0)
    def _():
        o_ref[...] = jnp.zeros_like(o_ref)

    # One lane-dense iota, cached and reused by every sub-tile (VPU relief).
    lane_iota = lax.broadcasted_iota(jnp.int32, (sub, r3_pad), 1)

    def body(t, carry):
        start = pl.multiple_of(t * sub, sub)
        idx_sub = idx_ref[0, pl.ds(start, sub), :]              # (sub, 1) int32
        feats_sub = feat_ref[0, :, pl.ds(start, sub)]           # (C2, sub) bf16
        # Scatter-add via one bf16 MXU pass: (C2, sub) @ (sub, R3_pad), f32 acc.
        onehot = (lane_iota == idx_sub).astype(jnp.bfloat16)    # (sub, R3_pad)
        o_ref[0, 0] += jnp.dot(feats_sub, onehot,
                               preferred_element_type=jnp.float32)
        return carry

    lax.fori_loop(0, nt_sub, body, 0, unroll=True)


def voxelization(features, coords, resolution=8, normalize=True, eps=0.0):
    """features: (B, N, C), coords: (B, N, 3) ->
       (voxel_features (B, C, R, R, R), norm_coords (B, 3, N))"""
    B, N, C = features.shape
    R = int(resolution)
    R3 = R * R * R
    R3_pad = _round_up(R3, 128)               # lane-dense voxel axis

    # ---- normalization + flat index hoisted to the wrapper (fuses with stats) ----
    coords_f = coords.astype(jnp.float32)
    nc, flat = _normalize_coords(coords_f, R, normalize, eps)          # (B,N,3),(B,N)
    norm_coords = jnp.transpose(nc, (0, 2, 1)).astype(coords.dtype)    # (B, 3, N)

    # ---- feature prep: channel-major bf16 rows.  f32 -> exact-ish hi/lo split ----
    use_split = features.dtype != jnp.bfloat16
    if use_split:
        f32 = features.astype(jnp.float32)
        hi = f32.astype(jnp.bfloat16)
        lo = (f32 - hi.astype(jnp.float32)).astype(jnp.bfloat16)
        rows = jnp.concatenate([hi, lo], axis=-1)                      # (B, N, 2C)
    else:
        rows = features
    rows_t = jnp.transpose(rows, (0, 2, 1)).astype(jnp.bfloat16)       # (B, 2C|C, N)
    ones_row = jnp.ones((B, 1, N), jnp.bfloat16)                       # fused counts
    feats_aug = jnp.concatenate([rows_t, ones_row], axis=1)            # (B, C2, N)
    C2 = feats_aug.shape[1]
    C2p = _round_up(C2, 8)

    # ---- tiling: biggest point tile whose real working set fits the VMEM budget ----
    try:
        vmem_phys = int(getattr(pltpu.get_tpu_info(), "vmem_capacity_bytes"))
    except Exception:
        vmem_phys = 64 * 1024 * 1024          # conservative (v7x physical)
    vmem_budget = min(int(vmem_phys * 0.7), 100 * 1024 * 1024)

    n_pad128 = max(128, _round_up(N, 128))
    TILE_N = 128
    for cand in (1024, 512, 256, 128):
        t = min(cand, n_pad128)
        s = 256 if t % 256 == 0 else 128
        if _vmem_estimate(t, s, C2p, R3_pad) <= vmem_budget:
            TILE_N = t
            break
    SUB = 256 if TILE_N % 256 == 0 else 128
    # TODO(synk): for very large R (>=64) or very large C the (C2, R^3) accumulator
    # block alone exceeds VMEM; that case needs an extra grid axis over the voxel dim.

    # Give the second TensorCore work when B is small (exact: sums/counts are associative).
    NSPLIT = 2 if (B == 1 and n_pad128 // TILE_N >= 2) else 1
    N_pad = _round_up(N, TILE_N * NSPLIT)
    NT_total = N_pad // TILE_N
    NT_ps = NT_total // NSPLIT

    if N_pad != N:
        feats_aug = jnp.pad(feats_aug, ((0, 0), (0, 0), (0, N_pad - N)))
        flat = jnp.pad(flat, ((0, 0), (0, N_pad - N)), constant_values=-1)
    idx = flat.astype(jnp.int32)[..., None]                            # (B, N_pad, 1)

    kernel = functools.partial(_voxel_accum_kernel, sub=SUB,
                               nt_sub=TILE_N // SUB, r3_pad=R3_pad)

    acc = pl.pallas_call(
        kernel,
        out_shape=jax.ShapeDtypeStruct((B, NSPLIT, C2, R3_pad), jnp.float32),
        grid_spec=pltpu.PrefetchScalarGridSpec(
            num_scalar_prefetch=0,
            grid=(B, NSPLIT, NT_ps),                                   # reduction axis last
            in_specs=[
                pl.BlockSpec((1, TILE_N, 1), lambda b, s, n: (b, s * NT_ps + n, 0)),
                pl.BlockSpec((1, C2, TILE_N), lambda b, s, n: (b, 0, s * NT_ps + n)),
            ],
            out_specs=pl.BlockSpec((1, 1, C2, R3_pad), lambda b, s, n: (b, s, 0, 0)),
        ),
        compiler_params=pltpu.CompilerParams(
            dimension_semantics=("parallel", "parallel", "arbitrary"),
            vmem_limit_bytes=vmem_budget),
    )(idx, feats_aug)

    # ---- combine splits, recombine hi/lo, divide by counts (small fused XLA op) ----
    acc = jnp.sum(acc, axis=1) if NSPLIT > 1 else acc[:, 0]            # (B, C2, R3_pad)
    counts = acc[:, C2 - 1:C2, :]                                      # (B, 1, R3_pad)
    if use_split:
        sums = acc[:, :C, :] + acc[:, C:2 * C, :]
    else:
        sums = acc[:, :C, :]
    voxf = sums / jnp.maximum(counts, 1.0)
    voxf = voxf[:, :, :R3].reshape(B, C, R, R, R).astype(features.dtype)
    return voxf, norm_coords


def _reference(features, coords, R, normalize=True, eps=0.0):
    """Pure-JAX reference mirroring the PyTorch module (avg_voxelize)."""
    f32 = features.astype(jnp.float32)
    nc, flat = _normalize_coords(coords.astype(jnp.float32), R, normalize, eps)
    onehot = jax.nn.one_hot(flat, R * R * R, dtype=jnp.float32)        # (B, N, R3)
    sums = jnp.einsum('bnc,bnk->bck', f32, onehot)
    cnt = jnp.sum(onehot, axis=1)[:, None, :]
    avg = sums / jnp.maximum(cnt, 1.0)
    B, N, C = features.shape
    return avg.reshape(B, C, R, R, R), jnp.transpose(nc, (0, 2, 1))


if __name__ == "__main__":
    key = jax.random.PRNGKey(0)
    k1, k2 = jax.random.split(key)
    B, N, C, R = 2, 128, 8, 8
    features = jax.random.normal(k1, (B, N, C), dtype=jnp.float32)
    coords = jax.random.uniform(k2, (B, N, 3), dtype=jnp.float32,
                                minval=-1.0, maxval=1.0)

    voxf, nc = voxelization(features, coords, resolution=R, normalize=True, eps=0.0)
    jax.block_until_ready((voxf, nc))

    ref_voxf, ref_nc = _reference(features, coords, R, normalize=True, eps=0.0)
    np.testing.assert_allclose(np.asarray(nc), np.asarray(ref_nc), atol=1e-5, rtol=1e-5)
    np.testing.assert_allclose(np.asarray(voxf), np.asarray(ref_voxf), atol=1e-4, rtol=1e-4)

    assert voxf.shape == (B, C, R, R, R)
    assert nc.shape == (B, 3, N)
    print("KERNEL_OK")
</pallas_src>

<mosaic_0001>
module attributes {stable_mosaic.version = 11 : i64} {
  func.func @_voxel_accum_kernel(%arg0: i32, %arg1: i32, %arg2: i32, %arg3: memref<1x128x1xi32, #tpu.memory_space<vmem>>, %arg4: memref<1x17x128xbf16, #tpu.memory_space<vmem>>, %arg5: memref<1x1x17x512xf32, #tpu.memory_space<vmem>>) attributes {dimension_semantics = [#tpu.dimension_semantics<parallel>, #tpu.dimension_semantics<parallel>, #tpu.dimension_semantics<arbitrary>], iteration_bounds = array<i64: 2, 1, 1>, scalar_prefetch = 0 : i64, scratch_operands = 0 : i64, tpu.core_type = #tpu.core_type<tc>, window_params = [{transform_indices = @transform_0, window_bounds = array<i64: 1, 128, 1>}, {transform_indices = @transform_1, window_bounds = array<i64: 1, 17, 128>}, {transform_indices = @transform_2, window_bounds = array<i64: 1, 1, 17, 512>}]} {
    %c0_i32 = arith.constant 0 : i32
    %0 = arith.cmpi eq, %arg2, %c0_i32 : i32
    %1 = arith.extui %0 : i1 to i32
    %c0_i32_0 = arith.constant 0 : i32
    %2 = arith.cmpi ne, %1, %c0_i32_0 : i32
    scf.if %2 {
      %cst_13 = arith.constant 0.000000e+00 : f32
      %24 = vector.broadcast %cst_13 : f32 to vector<1x1x17x512xf32>
      %c0_14 = arith.constant 0 : index
      %c0_15 = arith.constant 0 : index
      %c0_16 = arith.constant 0 : index
      %c0_17 = arith.constant 0 : index
      %25 = vector.load %arg5[%c0_14, %c0_15, %c0_16, %c0_17] : memref<1x1x17x512xf32, #tpu.memory_space<vmem>>, vector<1x1x17x512xf32>
      tpu.vector_store %arg5[%c0_14, %c0_15, %c0_16, %c0_17], %24 {strides = array<i32>} : memref<1x1x17x512xf32, #tpu.memory_space<vmem>>, vector<1x1x17x512xf32>,
    } else {
    }
    %3 = tpu.iota {dimensions = array<i32: 1>} : vector<128x512xi32>
    %c0_i32_1 = arith.constant 0 : i32
    %c128_i32 = arith.constant 128 : i32
    %4 = arith.muli %c0_i32_1, %c128_i32 : i32
    %5 = tpu.assume_multiple %4, 128 : i32
    %c0 = arith.constant 0 : index
    %6 = arith.index_cast %5 : i32 to index
    %c0_2 = arith.constant 0 : index
    %7 = vector.load %arg3[%c0, %6, %c0_2] : memref<1x128x1xi32, #tpu.memory_space<vmem>>, vector<1x128x1xi32>
    %8 = vector.shape_cast %7 : vector<1x128x1xi32> to vector<128x1xi32>
    %c0_3 = arith.constant 0 : index
    %c0_4 = arith.constant 0 : index
    %9 = arith.index_cast %5 : i32 to index
    %10 = vector.load %arg4[%c0_3, %c0_4, %9] : memref<1x17x128xbf16, #tpu.memory_space<vmem>>, vector<1x17x128xbf16>
    %11 = vector.shape_cast %10 : vector<1x17x128xbf16> to vector<17x128xbf16>
    %12 = vector.broadcast %8 : vector<128x1xi32> to vector<128x512xi32>
    %13 = arith.cmpi eq, %3, %12 : vector<128x512xi32>
    %14 = arith.extui %13 : vector<128x512xi1> to vector<128x512xi32>
    %15 = arith.sitofp %14 : vector<128x512xi32> to vector<128x512xf32>
    %16 = arith.truncf %15 : vector<128x512xf32> to vector<128x512xbf16>
    %c0_5 = arith.constant 0 : index
    %c0_6 = arith.constant 0 : index
    %c0_7 = arith.constant 0 : index
    %c0_8 = arith.constant 0 : index
    %17 = vector.load %arg5[%c0_5, %c0_6, %c0_7, %c0_8] : memref<1x1x17x512xf32, #tpu.memory_space<vmem>>, vector<1x1x17x512xf32>
    %18 = vector.shape_cast %17 : vector<1x1x17x512xf32> to vector<17x512xf32>
    %cst = arith.constant dense<0.000000e+00> : vector<17x512xf32>
    %19 = tpu.matmul %11, %16, %cst {dimension_numbers = #tpu.dot_dimension_numbers<[1], [0], [0], [1], [0, 0, 1, 1], [], []>} : vector<17x128xbf16>, vector<128x512xbf16>, vector<17x512xf32> -> vector<17x512xf32>
    %20 = arith.addf %18, %19 : vector<17x512xf32>
    %c0_9 = arith.constant 0 : index
    %c0_10 = arith.constant 0 : index
    %c0_11 = arith.constant 0 : index
    %c0_12 = arith.constant 0 : index
    %21 = vector.load %arg5[%c0_9, %c0_10, %c0_11, %c0_12] : memref<1x1x17x512xf32, #tpu.memory_space<vmem>>, vector<1x1x17x512xf32>
    %22 = vector.shape_cast %21 : vector<1x1x17x512xf32> to vector<17x512xf32>
    %23 = vector.shape_cast %20 : vector<17x512xf32> to vector<1x1x17x512xf32>
    tpu.vector_store %arg5[%c0_9, %c0_10, %c0_11, %c0_12], %23 {strides = array<i32>} : memref<1x1x17x512xf32, #tpu.memory_space<vmem>>, vector<1x1x17x512xf32>,
    %c1_i32 = arith.constant 1 : i32
    return
  }
  func.func @transform_0(%arg0: i32, %arg1: i32, %arg2: i32) -> (i32, i32, i32) {
    %c1_i32 = arith.constant 1 : i32
    %0 = arith.muli %arg1, %c1_i32 : i32
    %1 = arith.addi %0, %arg2 : i32
    %c0_i32 = arith.constant 0 : i32
    %c0_i32_0 = arith.constant 0 : i32
    return %arg0, %1, %c0_i32 : i32, i32, i32
  }
  func.func @transform_1(%arg0: i32, %arg1: i32, %arg2: i32) -> (i32, i32, i32) {
    %c1_i32 = arith.constant 1 : i32
    %0 = arith.muli %arg1, %c1_i32 : i32
    %1 = arith.addi %0, %arg2 : i32
    %c0_i32 = arith.constant 0 : i32
    %c0_i32_0 = arith.constant 0 : i32
    return %arg0, %c0_i32, %1 : i32, i32, i32
  }
  func.func @transform_2(%arg0: i32, %arg1: i32, %arg2: i32) -> (i32, i32, i32, i32) {
    %c0_i32 = arith.constant 0 : i32
    %c0_i32_0 = arith.constant 0 : i32
    %c0_i32_1 = arith.constant 0 : i32
    return %arg0, %arg1, %c0_i32, %c0_i32_0 : i32, i32, i32, i32
  }
}

</mosaic_0001>

<llo_original>
// kernel: tpu_custom_call.1
$region0: #{tpu_custom_call.1}
  #allocation0 [shape = 'u32[]', space=smem, size = 0x4, offset = 0x4, fixed_abs, tag = 'smem constant byte address 0x4 - core index']
  #allocation1 [shape = 'u32[144,128]{1,0:T(1,128)}', space=vmem, size = 0x12000, scoped, tag = 'internal scratch']
  %s0 = inlined_call_operand.vmem [shape: s32[2,128,1], index: 0, kind: input, shape index: {}]
  %s1 = inlined_call_operand.vmem [shape: bf16[2,17,128], index: 1, kind: input, shape index: {}]
  %s2 = inlined_call_operand.vmem [shape: f32[2,1,17,512], index: 2, kind: output, shape index: {}]
  %s3 = sld [smem:[#allocation0]]
  $region45: #{tpu_custom_call.1} parent=0
    _
  %s5 = ssub.s32 1, %s3
  %s6 = scalar_select 0, %s5, %s3
  loop: start=0, step=1, limit=4
  $region2: #{tpu_custom_call.1} parent=0 // loop_pre_header
    _
  $region3: #{tpu_custom_call.1} parent=0 // loop_header
    %s8 = sphi 0, %s12
    %p9 = scmp.ge.s32.totalorder %s8, 4
    %s15 = sphi 0, %s34
    %s16 = sphi 0, %s30
    %s17 = sphi 0, %s26
    %s18 = sphi 0, %s15
    %s19 = sphi 0, %s16
    %s20 = sphi 0, %s17
    %s21 = sphi 0, %s18
    %s22 = sphi 0, %s19
    %s23 = sphi 0, %s20
    %s41 = sphi 0, %s43
    %s44 = sphi 0, %s41
    %s45 = sphi 0, %s44
    %s61 = sphi 0, %s45
    %s71 = sphi 0, %s73
    %s74 = sphi 0, %s71
    %s75 = sphi 0, %s74
    %s91 = sphi 0, %s75
    %s99 = sphi 0, %s101
    %s102 = sphi 0, %s99
    %s103 = sphi 0, %s102
    %s119 = sphi 0, %s103
  $region4: #{tpu_custom_call.1} parent=0 // loop_header_branch
    %11 = sbr.rel (%p9) target = $region8
  $region5: #{tpu_custom_call.1} parent=0 // loop_body
    %s13 = ssub.s32 %s8, 1
    %s14 = ssub.s32 %s8, 2
    %s24 = sadd.s32 1, %s17
    %p25 = scmp.ge.s32.totalorder %s24, 1
    %s26 = scalar_select %p25, 0, %s24
    %s27 = sadd.s32 1, %s16
    %s28 = scalar_select %p25, %s27, %s16
    %p29 = scmp.ge.s32.totalorder %s28, 1
    %s30 = scalar_select %p29, 0, %s28
    %s31 = sadd.s32 1, %s15
    %s32 = scalar_select %p29, %s31, %s15
    %p33 = scmp.ge.s32.totalorder %s32, 2
    %s34 = scalar_select %p33, 0, %s32
    %s35 = sadd.s32 %s16, %s17
    %s36 = sadd.s32 %s30, %s26
    %s37 = ssub.s32 %s15, %s34
    %s38 = ssub.s32 %s35, %s36
    %s39 = sor.u32 %s37, %s38
    %p40 = scmp.eq.s32.totalorder %s39, 0
    %s42 = sadd.s32 %s41, 1
    %s43 = scalar_select %p40, %s41, %s42
    %p46 = pneg %p40
    %p47 = scmp.eq.s32.totalorder %s8, 1
    %p48 = por %p46, %p47
    %p49 = scmp.ne.s32.totalorder %s41, %s44
    %p50 = scmp.eq.s32.totalorder %s8, 0
    %p51 = por %p49, %p50
    %p52 = scmp.ne.s32.totalorder %s41, %s44
    %p53 = scmp.eq.s32.totalorder %s13, 1
    %p54 = por %p52, %p53
    %p55 = scmp.ne.s32.totalorder %s44, %s45
    %p56 = scmp.eq.s32.totalorder %s13, 0
    %p57 = por %p55, %p56
    %p58 = scmp.ne.s32.totalorder %s44, %s45
    %p59 = scmp.eq.s32.totalorder %s14, 1
    %p60 = por %p58, %p59
    %p62 = scmp.ne.s32.totalorder %s45, %s61
    %p63 = scmp.eq.s32.totalorder %s14, 0
    %p64 = por %p62, %p63
    %s65 = sadd.s32 %s16, %s17
    %s66 = sadd.s32 %s30, %s26
    %s67 = ssub.s32 %s15, %s34
    %s68 = ssub.s32 %s65, %s66
    %s69 = sor.u32 %s67, %s68
    %p70 = scmp.eq.s32.totalorder %s69, 0
    %s72 = sadd.s32 %s71, 1
    %s73 = scalar_select %p70, %s71, %s72
    %p76 = pneg %p70
    %p77 = scmp.eq.s32.totalorder %s8, 1
    %p78 = por %p76, %p77
    %p79 = scmp.ne.s32.totalorder %s71, %s74
    %p80 = scmp.eq.s32.totalorder %s8, 0
    %p81 = por %p79, %p80
    %p82 = scmp.ne.s32.totalorder %s71, %s74
    %p83 = scmp.eq.s32.totalorder %s13, 1
    %p84 = por %p82, %p83
    %p85 = scmp.ne.s32.totalorder %s74, %s75
    %p86 = scmp.eq.s32.totalorder %s13, 0
    %p87 = por %p85, %p86
    %p88 = scmp.ne.s32.totalorder %s74, %s75
    %p89 = scmp.eq.s32.totalorder %s14, 1
    %p90 = por %p88, %p89
    %p92 = scmp.ne.s32.totalorder %s75, %s91
    %p93 = scmp.eq.s32.totalorder %s14, 0
    %p94 = por %p92, %p93
    %s95 = ssub.s32 %s15, %s34
    %s96 = ssub.s32 %s16, %s30
    %s97 = sor.u32 %s95, %s96
    %p98 = scmp.eq.s32.totalorder %s97, 0
    %s100 = sadd.s32 %s99, 1
    %s101 = scalar_select %p98, %s99, %s100
    %p104 = pneg %p98
    %p105 = scmp.eq.s32.totalorder %s8, 1
    %p106 = por %p104, %p105
    %p107 = scmp.ne.s32.totalorder %s99, %s102
    %p108 = scmp.eq.s32.totalorder %s8, 0
    %p109 = por %p107, %p108
    %p110 = scmp.ne.s32.totalorder %s99, %s102
    %p111 = scmp.eq.s32.totalorder %s13, 1
    %p112 = por %p110, %p111
    %p113 = scmp.ne.s32.totalorder %s102, %s103
    %p114 = scmp.eq.s32.totalorder %s13, 0
    %p115 = por %p113, %p114
    %p116 = scmp.ne.s32.totalorder %s102, %s103
    %p117 = scmp.eq.s32.totalorder %s14, 1
    %p118 = por %p116, %p117
    %p120 = scmp.ne.s32.totalorder %s103, %s119
    %p121 = scmp.eq.s32.totalorder %s14, 0
    %p122 = por %p120, %p121
    %p123 = scmp.le.s32.totalorder 1, %s8
    %p124 = scmp.lt.s32.totalorder %s8, 3
    %p125 = pnand %p123, %p124
    %p126 = pneg %p125
    // Predicated region
    $region9: #{tpu_custom_call.1} parent=5 // pred_check
      _
    $region10: #{tpu_custom_call.1} parent=5 // pred_check_branch
      %128 = sbr.rel (%p125) target = $region12
    $region11: #{tpu_custom_call.1} parent=5 // pred_region
      %s129 = ssub.s32 %s8, 1
    $region12: #{tpu_custom_call.1} parent=5 // pred_fallthru
      _
    %p130 = scmp.lt.s32.totalorder %s8, 2
    // Predicated region
    $region13: #{tpu_custom_call.1} parent=5 // pred_check
      %p131 = pneg %p130
    $region14: #{tpu_custom_call.1} parent=5 // pred_check_branch
      %133 = sbr.rel (%p131) target = $region16
    $region15: #{tpu_custom_call.1} parent=5 // pred_region
      // Predicated region
      $region17: #{tpu_custom_call.1} parent=15 // pred_check
        %p134 = pneg %p51
      $region18: #{tpu_custom_call.1} parent=15 // pred_check_branch
        %136 = sbr.rel (%p134) target = $region20
      $region19: #{tpu_custom_call.1} parent=15 // pred_region
        %s137 = sadd.s32 %s16, %s17
        %s138 = smul.u32 16, %s137
        %p139 = scmp.lt.s32.totalorder %s15, 1
        %s140 = scalar_select %p139, %s15, 1
        %p141 = scmp.lt.s32.totalorder %s138, 15
        %s142 = scalar_select %p141, %s138, 15
        %s143 = smul.addr %s140, 16
        %s144 = sadd.s32 %s142, %s143
        %s145 = smul.addr %s144, 8
        %s146 = scalar_lea.vmem %s0, %s145
        %s147 = sadd.s32 %s16, %s17
        %s148 = smul.u32 16, %s147
      $region20: #{tpu_custom_call.1} parent=15 // pred_fallthru
        _
      // Predicated region
      $region21: #{tpu_custom_call.1} parent=15 // pred_check
        %p149 = pneg %p81
      $region22: #{tpu_custom_call.1} parent=15 // pred_check_branch
        %151 = sbr.rel (%p149) target = $region24
      $region23: #{tpu_custom_call.1} parent=15 // pred_region
        %s152 = sadd.s32 %s16, %s17
        %p153 = scmp.lt.s32.totalorder %s15, 1
        %s154 = scalar_select %p153, %s15, 1
        %p155 = scmp.lt.s32.totalorder %s152, 0
        %s156 = scalar_select %p155, %s152, 0
        %s157 = smul.addr %s154, 3
        %s158 = sadd.s32 %s156, %s157
        %s159 = smul.addr %s158, 4
        %s160 = scalar_lea.vmem %s1, %s159
        %s161 = sadd.s32 %s16, %s17
      $region24: #{tpu_custom_call.1} parent=15 // pred_fallthru
        _
    $region16: #{tpu_custom_call.1} parent=5 // pred_fallthru
      _
    %p162 = scmp.le.s32.totalorder 1, %s8
    %p163 = scmp.lt.s32.totalorder %s8, 3
    %p164 = pnand %p162, %p163
    %p165 = pneg %p164
    // Predicated region
    $region25: #{tpu_custom_call.1} parent=5 // pred_check
      _
    $region26: #{tpu_custom_call.1} parent=5 // pred_check_branch
      %167 = sbr.rel (%p164) target = $region28
    $region27: #{tpu_custom_call.1} parent=5 // pred_region
      %s168 = ssub.s32 %s8, 1
      %s169 = sadd.s32 %s19, %s20
      %s170 = smul.u32 16, %s169
      %p171 = scmp.lt.s32.totalorder %s18, 1
      %s172 = scalar_select %p171, %s18, 1
      %p173 = scmp.lt.s32.totalorder %s170, 15
      %s174 = scalar_select %p173, %s170, 15
      %s175 = smul.addr %s172, 16
      %s176 = sadd.s32 %s174, %s175
      %s177 = smul.addr %s176, 8
      %s178 = scalar_lea.vmem %s0, %s177
      %p179 = pneg %p57
      %p180 = pneg %p54
      %s181 = sadd.s32 %s19, %s20
      %p182 = scmp.lt.s32.totalorder %s18, 1
      %s183 = scalar_select %p182, %s18, 1
      %p184 = scmp.lt.s32.totalorder %s181, 0
      %s185 = scalar_select %p184, %s181, 0
      %s186 = smul.addr %s183, 3
      %s187 = sadd.s32 %s185, %s186
      %s188 = smul.addr %s187, 4
      %s189 = scalar_lea.vmem %s1, %s188
      %p190 = pneg %p87
      %p191 = pneg %p84
      %p192 = pneg %p115
      %p193 = pneg %p112
      %p194 = scmp.lt.s32.totalorder %s18, 1
      %s195 = scalar_select %p194, %s18, 1
      %p196 = scmp.lt.s32.totalorder %s19, 0
      %s197 = scalar_select %p196, %s19, 0
      %s198 = smul.addr %s197, 12
      %s199 = smul.addr %s195, 12
      %s200 = sadd.s32 %s198, %s199
      %s201 = smul.addr %s200, 8
      %s202 = scalar_lea.vmem %s2, %s201
      %s203 = sadd.s32 %s19, %s20
      %s204 = smul.u32 16, %s203
      %p205 = scmp.lt.s32.totalorder %s18, 1
      %s206 = scalar_select %p205, %s18, 1
      %p207 = scmp.lt.s32.totalorder %s204, 15
      %s208 = scalar_select %p207, %s204, 15
      %s209 = smul.addr %s206, 16
      %s210 = sadd.s32 %s208, %s209
      %s211 = smul.addr %s210, 8
      %s212 = scalar_lea.vmem %s0, %s211
      %s213 = sadd.s32 %s19, %s20
      %s214 = smul.u32 16, %s213
      %s215 = sadd.s32 %s19, %s20
      %p216 = scmp.lt.s32.totalorder %s18, 1
      %s217 = scalar_select %p216, %s18, 1
      %p218 = scmp.lt.s32.totalorder %s215, 0
      %s219 = scalar_select %p218, %s215, 0
      %s220 = smul.addr %s217, 3
      %s221 = sadd.s32 %s219, %s220
      %s222 = smul.addr %s221, 4
      %s223 = scalar_lea.vmem %s1, %s222
      %s224 = sadd.s32 %s19, %s20
      %p225 = scmp.lt.s32.totalorder %s18, 1
      %s226 = scalar_select %p225, %s18, 1
      %p227 = scmp.lt.s32.totalorder %s19, 0
      %s228 = scalar_select %p227, %s19, 0
      %s229 = smul.addr %s228, 12
      %s230 = smul.addr %s226, 12
      %s231 = sadd.s32 %s229, %s230
      %s232 = smul.addr %s231, 8
      %s233 = scalar_lea.vmem %s2, %s232
      %p235 = scmp.eq.s32.totalorder %s20, 0
      // Predicated region
      $region29: #{tpu_custom_call.1} parent=27 // pred_check
        %p236 = pneg %p235
      $region30: #{tpu_custom_call.1} parent=27 // pred_check_branch
        %238 = sbr.rel (%p236) target = $region32
      $region31: #{tpu_custom_call.1} parent=27 // pred_region
        %239 = vst [vmem:[%s233] sm:$0xff] 0.0
        %240 = vst [vmem:[%s233 + $0x8] sm:$0xff] 0.0
        %241 = vst [vmem:[%s233 + $0x10] sm:$0xff] 0.0
        %242 = vst [vmem:[%s233 + $0x18] sm:$0xff] 0.0
        %243 = vst [vmem:[%s233 + $0x20] sm:$0xff] 0.0
        %244 = vst [vmem:[%s233 + $0x28] sm:$0xff] 0.0
        %245 = vst [vmem:[%s233 + $0x30] sm:$0xff] 0.0
        %246 = vst [vmem:[%s233 + $0x38] sm:$0xff] 0.0
        %247 = vst [vmem:[%s233 + $0x40] sm:$0x1] 0.0
        %248 = vst [vmem:[%s233 + $0x48] sm:$0x1] 0.0
        %249 = vst [vmem:[%s233 + $0x50] sm:$0x1] 0.0
        %250 = vst [vmem:[%s233 + $0x58] sm:$0x1] 0.0
      $region32: #{tpu_custom_call.1} parent=27 // pred_fallthru
        _
      %v251 = vlaneseq
      %v252 = vand.u32 %v251, 127
      %v253 = vadd.s32 %v252, 128
      %v254 = vadd.s32 %v252, 256
      %v255 = vadd.s32 %v252, 384
      %v256 = vld [vmem:[%s212] sm:$0xff]
      %v257 = vld [vmem:[%s212 + $0x8] sm:$0xff]
      %v258 = vld [vmem:[%s212 + $0x10] sm:$0xff]
      %v259 = vld [vmem:[%s212 + $0x18] sm:$0xff]
      %v260 = vld [vmem:[%s212 + $0x20] sm:$0xff]
      %v261 = vld [vmem:[%s212 + $0x28] sm:$0xff]
      %v262 = vld [vmem:[%s212 + $0x30] sm:$0xff]
      %v263 = vld [vmem:[%s212 + $0x38] sm:$0xff]
      %v264 = vld [vmem:[%s212 + $0x40] sm:$0xff]
      %v265 = vld [vmem:[%s212 + $0x48] sm:$0xff]
      %v266 = vld [vmem:[%s212 + $0x50] sm:$0xff]
      %v267 = vld [vmem:[%s212 + $0x58] sm:$0xff]
      %v268 = vld [vmem:[%s212 + $0x60] sm:$0xff]
      %v269 = vld [vmem:[%s212 + $0x68] sm:$0xff]
      %v270 = vld [vmem:[%s212 + $0x70] sm:$0xff]
      %v271 = vld [vmem:[%s212 + $0x78] sm:$0xff]
      %v272 = vld [vmem:[%s223] sm:$0xf]
      %v273 = vld [vmem:[%s223 + $0x4] sm:$0xf]
      %v274 = vld [vmem:[%s223 + $0x8] sm:$0x1]
      %275 = vset.pattern.permute.xlu0 0
      %276 = vperm.xlu0 %275, %v256
      %v277 = vpop.permute.xlu0 %276
      %278 = vset.pattern.permute.xlu0 0
      %279 = vperm.xlu0 %278, %v257
      %v280 = vpop.permute.xlu0 %279
      %281 = vset.pattern.permute.xlu0 0
      %282 = vperm.xlu0 %281, %v258
      %v283 = vpop.permute.xlu0 %282
      %284 = vset.pattern.permute.xlu0 0
      %285 = vperm.xlu0 %284, %v259
      %v286 = vpop.permute.xlu0 %285
      %287 = vset.pattern.permute.xlu0 0
      %288 = vperm.xlu0 %287, %v260
      %v289 = vpop.permute.xlu0 %288
      %290 = vset.pattern.permute.xlu0 0
      %291 = vperm.xlu0 %290, %v261
      %v292 = vpop.permute.xlu0 %291
      %293 = vset.pattern.permute.xlu0 0
      %294 = vperm.xlu0 %293, %v262
      %v295 = vpop.permute.xlu0 %294
      %296 = vset.pattern.permute.xlu0 0
      %297 = vperm.xlu0 %296, %v263
      %v298 = vpop.permute.xlu0 %297
      %299 = vset.pattern.permute.xlu0 0
      %300 = vperm.xlu0 %299, %v264
      %v301 = vpop.permute.xlu0 %300
      %302 = vset.pattern.permute.xlu0 0
      %303 = vperm.xlu0 %302, %v265
      %v304 = vpop.permute.xlu0 %303
      %305 = vset.pattern.permute.xlu0 0
      %306 = vperm.xlu0 %305, %v266
      %v307 = vpop.permute.xlu0 %306
      %308 = vset.pattern.permute.xlu0 0
      %309 = vperm.xlu0 %308, %v267
      %v310 = vpop.permute.xlu0 %309
      %311 = vset.pattern.permute.xlu0 0
      %312 = vperm.xlu0 %311, %v268
      %v313 = vpop.permute.xlu0 %312
      %314 = vset.pattern.permute.xlu0 0
      %315 = vperm.xlu0 %314, %v269
      %v316 = vpop.permute.xlu0 %315
      %317 = vset.pattern.permute.xlu0 0
      %318 = vperm.xlu0 %317, %v270
      %v319 = vpop.permute.xlu0 %318
      %320 = vset.pattern.permute.xlu0 0
      %321 = vperm.xlu0 %320, %v271
      %v322 = vpop.permute.xlu0 %321
      %vm323 = vcmp.eq.s32.totalorder %v252, %v277
      %vm324 = vcmp.eq.s32.totalorder %v253, %v277
      %vm325 = vcmp.eq.s32.totalorder %v254, %v277
      %vm326 = vcmp.eq.s32.totalorder %v255, %v277
      %vm327 = vcmp.eq.s32.totalorder %v252, %v280
      %vm328 = vcmp.eq.s32.totalorder %v253, %v280
      %vm329 = vcmp.eq.s32.totalorder %v254, %v280
      %vm330 = vcmp.eq.s32.totalorder %v255, %v280
      %vm331 = vcmp.eq.s32.totalorder %v252, %v283
      %vm332 = vcmp.eq.s32.totalorder %v253, %v283
      %vm333 = vcmp.eq.s32.totalorder %v254, %v283
      %vm334 = vcmp.eq.s32.totalorder %v255, %v283
      %vm335 = vcmp.eq.s32.totalorder %v252, %v286
      %vm336 = vcmp.eq.s32.totalorder %v253, %v286
      %vm337 = vcmp.eq.s32.totalorder %v254, %v286
      %vm338 = vcmp.eq.s32.totalorder %v255, %v286
      %vm339 = vcmp.eq.s32.totalorder %v252, %v289
      %vm340 = vcmp.eq.s32.totalorder %v253, %v289
      %vm341 = vcmp.eq.s32.totalorder %v254, %v289
      %vm342 = vcmp.eq.s32.totalorder %v255, %v289
      %vm343 = vcmp.eq.s32.totalorder %v252, %v292
      %vm344 = vcmp.eq.s32.totalorder %v253, %v292
      %vm345 = vcmp.eq.s32.totalorder %v254, %v292
      %vm346 = vcmp.eq.s32.totalorder %v255, %v292
      %vm347 = vcmp.eq.s32.totalorder %v252, %v295
      %vm348 = vcmp.eq.s32.totalorder %v253, %v295
      %vm349 = vcmp.eq.s32.totalorder %v254, %v295
      %vm350 = vcmp.eq.s32.totalorder %v255, %v295
      %vm351 = vcmp.eq.s32.totalorder %v252, %v298
      %vm352 = vcmp.eq.s32.totalorder %v253, %v298
      %vm353 = vcmp.eq.s32.totalorder %v254, %v298
      %vm354 = vcmp.eq.s32.totalorder %v255, %v298
      %vm355 = vcmp.eq.s32.totalorder %v252, %v301
      %vm356 = vcmp.eq.s32.totalorder %v253, %v301
      %vm357 = vcmp.eq.s32.totalorder %v254, %v301
      %vm358 = vcmp.eq.s32.totalorder %v255, %v301
      %vm359 = vcmp.eq.s32.totalorder %v252, %v304
      %vm360 = vcmp.eq.s32.totalorder %v253, %v304
      %vm361 = vcmp.eq.s32.totalorder %v254, %v304
      %vm362 = vcmp.eq.s32.totalorder %v255, %v304
      %vm363 = vcmp.eq.s32.totalorder %v252, %v307
      %vm364 = vcmp.eq.s32.totalorder %v253, %v307
      %vm365 = vcmp.eq.s32.totalorder %v254, %v307
      %vm366 = vcmp.eq.s32.totalorder %v255, %v307
      %vm367 = vcmp.eq.s32.totalorder %v252, %v310
      %vm368 = vcmp.eq.s32.totalorder %v253, %v310
      %vm369 = vcmp.eq.s32.totalorder %v254, %v310
      %vm370 = vcmp.eq.s32.totalorder %v255, %v310
      %vm371 = vcmp.eq.s32.totalorder %v252, %v313
      %vm372 = vcmp.eq.s32.totalorder %v253, %v313
      %vm373 = vcmp.eq.s32.totalorder %v254, %v313
      %vm374 = vcmp.eq.s32.totalorder %v255, %v313
      %vm375 = vcmp.eq.s32.totalorder %v252, %v316
      %vm376 = vcmp.eq.s32.totalorder %v253, %v316
      %vm377 = vcmp.eq.s32.totalorder %v254, %v316
      %vm378 = vcmp.eq.s32.totalorder %v255, %v316
      %vm379 = vcmp.eq.s32.totalorder %v252, %v319
      %vm380 = vcmp.eq.s32.totalorder %v253, %v319
      %vm381 = vcmp.eq.s32.totalorder %v254, %v319
      %vm382 = vcmp.eq.s32.totalorder %v255, %v319
      %vm383 = vcmp.eq.s32.totalorder %v252, %v322
      %vm384 = vcmp.eq.s32.totalorder %v253, %v322
      %vm385 = vcmp.eq.s32.totalorder %v254, %v322
      %vm386 = vcmp.eq.s32.totalorder %v255, %v322
      %v387 = vsel %vm323, 1, 0
      %v388 = vsel %vm324, 1, 0
      %v389 = vsel %vm325, 1, 0
      %v390 = vsel %vm326, 1, 0
      %v391 = vsel %vm327, 1, 0
      %v392 = vsel %vm328, 1, 0
      %v393 = vsel %vm329, 1, 0
      %v394 = vsel %vm330, 1, 0
      %v395 = vsel %vm331, 1, 0
      %v396 = vsel %vm332, 1, 0
      %v397 = vsel %vm333, 1, 0
      %v398 = vsel %vm334, 1, 0
      %v399 = vsel %vm335, 1, 0
      %v400 = vsel %vm336, 1, 0
      %v401 = vsel %vm337, 1, 0
      %v402 = vsel %vm338, 1, 0
      %v403 = vsel %vm339, 1, 0
      %v404 = vsel %vm340, 1, 0
      %v405 = vsel %vm341, 1, 0
      %v406 = vsel %vm342, 1, 0
      %v407 = vsel %vm343, 1, 0
      %v408 = vsel %vm344, 1, 0
      %v409 = vsel %vm345, 1, 0
      %v410 = vsel %vm346, 1, 0
      %v411 = vsel %vm347, 1, 0
      %v412 = vsel %vm348, 1, 0
      %v413 = vsel %vm349, 1, 0
      %v414 = vsel %vm350, 1, 0
      %v415 = vsel %vm351, 1, 0
      %v416 = vsel %vm352, 1, 0
      %v417 = vsel %vm353, 1, 0
      %v418 = vsel %vm354, 1, 0
      %v419 = vsel %vm355, 1, 0
      %v420 = vsel %vm356, 1, 0
      %v421 = vsel %vm357, 1, 0
      %v422 = vsel %vm358, 1, 0
      %v423 = vsel %vm359, 1, 0
      %v424 = vsel %vm360, 1, 0
      %v425 = vsel %vm361, 1, 0
      %v426 = vsel %vm362, 1, 0
      %v427 = vsel %vm363, 1, 0
      %v428 = vsel %vm364, 1, 0
      %v429 = vsel %vm365, 1, 0
      %v430 = vsel %vm366, 1, 0
      %v431 = vsel %vm367, 1, 0
      %v432 = vsel %vm368, 1, 0
      %v433 = vsel %vm369, 1, 0
      %v434 = vsel %vm370, 1, 0
      %v435 = vsel %vm371, 1, 0
      %v436 = vsel %vm372, 1, 0
      %v437 = vsel %vm373, 1, 0
      %v438 = vsel %vm374, 1, 0
      %v439 = vsel %vm375, 1, 0
      %v440 = vsel %vm376, 1, 0
      %v441 = vsel %vm377, 1, 0
      %v442 = vsel %vm378, 1, 0
      %v443 = vsel %vm379, 1, 0
      %v444 = vsel %vm380, 1, 0
      %v445 = vsel %vm381, 1, 0
      %v446 = vsel %vm382, 1, 0
      %v447 = vsel %vm383, 1, 0
      %v448 = vsel %vm384, 1, 0
      %v449 = vsel %vm385, 1, 0
      %v450 = vsel %vm386, 1, 0
      %v451 = vcvt.s32.f32 %v387
      %v452 = vcvt.s32.f32 %v388
      %v453 = vcvt.s32.f32 %v389
      %v454 = vcvt.s32.f32 %v390
      %v455 = vcvt.s32.f32 %v391
      %v456 = vcvt.s32.f32 %v392
      %v457 = vcvt.s32.f32 %v393
      %v458 = vcvt.s32.f32 %v394
      %v459 = vcvt.s32.f32 %v395
      %v460 = vcvt.s32.f32 %v396
      %v461 = vcvt.s32.f32 %v397
      %v462 = vcvt.s32.f32 %v398
      %v463 = vcvt.s32.f32 %v399
      %v464 = vcvt.s32.f32 %v400
      %v465 = vcvt.s32.f32 %v401
      %v466 = vcvt.s32.f32 %v402
      %v467 = vcvt.s32.f32 %v403
      %v468 = vcvt.s32.f32 %v404
      %v469 = vcvt.s32.f32 %v405
      %v470 = vcvt.s32.f32 %v406
      %v471 = vcvt.s32.f32 %v407
      %v472 = vcvt.s32.f32 %v408
      %v473 = vcvt.s32.f32 %v409
      %v474 = vcvt.s32.f32 %v410
      %v475 = vcvt.s32.f32 %v411
      %v476 = vcvt.s32.f32 %v412
      %v477 = vcvt.s32.f32 %v413
      %v478 = vcvt.s32.f32 %v414
      %v479 = vcvt.s32.f32 %v415
      %v480 = vcvt.s32.f32 %v416
      %v481 = vcvt.s32.f32 %v417
      %v482 = vcvt.s32.f32 %v418
      %v483 = vcvt.s32.f32 %v419
      %v484 = vcvt.s32.f32 %v420
      %v485 = vcvt.s32.f32 %v421
      %v486 = vcvt.s32.f32 %v422
      %v487 = vcvt.s32.f32 %v423
      %v488 = vcvt.s32.f32 %v424
      %v489 = vcvt.s32.f32 %v425
      %v490 = vcvt.s32.f32 %v426
      %v491 = vcvt.s32.f32 %v427
      %v492 = vcvt.s32.f32 %v428
      %v493 = vcvt.s32.f32 %v429
      %v494 = vcvt.s32.f32 %v430
      %v495 = vcvt.s32.f32 %v431
      %v496 = vcvt.s32.f32 %v432
      %v497 = vcvt.s32.f32 %v433
      %v498 = vcvt.s32.f32 %v434
      %v499 = vcvt.s32.f32 %v435
      %v500 = vcvt.s32.f32 %v436
      %v501 = vcvt.s32.f32 %v437
      %v502 = vcvt.s32.f32 %v438
      %v503 = vcvt.s32.f32 %v439
      %v504 = vcvt.s32.f32 %v440
      %v505 = vcvt.s32.f32 %v441
      %v506 = vcvt.s32.f32 %v442
      %v507 = vcvt.s32.f32 %v443
      %v508 = vcvt.s32.f32 %v444
      %v509 = vcvt.s32.f32 %v445
      %v510 = vcvt.s32.f32 %v446
      %v511 = vcvt.s32.f32 %v447
      %v512 = vcvt.s32.f32 %v448
      %v513 = vcvt.s32.f32 %v449
      %v514 = vcvt.s32.f32 %v450
      %v515 = vpack.c.bf16 %v455, %v451
      %v516 = vpack.c.bf16 %v456, %v452
      %v517 = vpack.c.bf16 %v457, %v453
      %v518 = vpack.c.bf16 %v458, %v454
      %v519 = vpack.c.bf16 %v463, %v459
      %v520 = vpack.c.bf16 %v464, %v460
      %v521 = vpack.c.bf16 %v465, %v461
      %v522 = vpack.c.bf16 %v466, %v462
      %v523 = vpack.c.bf16 %v471, %v467
      %v524 = vpack.c.bf16 %v472, %v468
      %v525 = vpack.c.bf16 %v473, %v469
      %v526 = vpack.c.bf16 %v474, %v470
      %v527 = vpack.c.bf16 %v479, %v475
      %v528 = vpack.c.bf16 %v480, %v476
      %v529 = vpack.c.bf16 %v481, %v477
      %v530 = vpack.c.bf16 %v482, %v478
      %v531 = vpack.c.bf16 %v487, %v483
      %v532 = vpack.c.bf16 %v488, %v484
      %v533 = vpack.c.bf16 %v489, %v485
      %v534 = vpack.c.bf16 %v490, %v486
      %v535 = vpack.c.bf16 %v495, %v491
      %v536 = vpack.c.bf16 %v496, %v492
      %v537 = vpack.c.bf16 %v497, %v493
      %v538 = vpack.c.bf16 %v498, %v494
      %v539 = vpack.c.bf16 %v503, %v499
      %v540 = vpack.c.bf16 %v504, %v500
      %v541 = vpack.c.bf16 %v505, %v501
      %v542 = vpack.c.bf16 %v506, %v502
      %v543 = vpack.c.bf16 %v511, %v507
      %v544 = vpack.c.bf16 %v512, %v508
      %v545 = vpack.c.bf16 %v513, %v509
      %v546 = vpack.c.bf16 %v514, %v510
      %v547 = vld [vmem:[%s233] sm:$0xff]
      %v548 = vld [vmem:[%s233 + $0x8] sm:$0xff]
      %v549 = vld [vmem:[%s233 + $0x10] sm:$0xff]
      %v550 = vld [vmem:[%s233 + $0x18] sm:$0xff]
      %v551 = vld [vmem:[%s233 + $0x20] sm:$0xff]
      %v552 = vld [vmem:[%s233 + $0x28] sm:$0xff]
      %v553 = vld [vmem:[%s233 + $0x30] sm:$0xff]
      %v554 = vld [vmem:[%s233 + $0x38] sm:$0xff]
      %v555 = vld [vmem:[%s233 + $0x40] sm:$0x1]
      %v556 = vld [vmem:[%s233 + $0x48] sm:$0x1]
      %v557 = vld [vmem:[%s233 + $0x50] sm:$0x1]
      %v558 = vld [vmem:[%s233 + $0x58] sm:$0x1]
      %v562 = vunpack.c.l.b16 %v272
      %v563 = vunpack.c.l.b16 %v273
      %v564 = vunpack.c.l.b16 %v274
      %v565 = vpack.c.b16 %v563, %v562
      %v566 = vpack.c.b16 %v564, %v564
      %569 = vmatprep.subr.bf16.mxu0 %v516
      %570 = vmatpush1.bf16.msra.mxu0 %v515
      %571 = vmatprep.subr.bf16.mxu0 %v520
      %572 = vmatpush1.bf16.msra.mxu0 %v519
      %573 = vmatprep.subr.bf16.mxu0 %v524
      %574 = vmatpush1.bf16.msra.mxu0 %v523
      %575 = vmatprep.subr.bf16.mxu0 %v528
      %576 = vmatpush1.bf16.msra.mxu0 %v527
      %577 = vmatprep.subr.bf16.mxu0 %v532
      %578 = vmatpush1.bf16.msra.mxu0 %v531
      %579 = vmatprep.subr.bf16.mxu0 %v536
      %580 = vmatpush1.bf16.msra.mxu0 %v535
      %581 = vmatprep.subr.bf16.mxu0 %v540
      %582 = vmatpush1.bf16.msra.mxu0 %v539
      %583 = vmatprep.subr.bf16.mxu0 %v544
      %584 = vmatpush1.bf16.msra.mxu0 %v543
      %585 = vmatprep.subr.bf16.mxu0 0
      %586 = vmatpush1.bf16.msra.mxu0 0
      %587 = vmatprep.subr.bf16.mxu0 0
      %588 = vmatpush1.bf16.msra.mxu0 0
      %589 = vmatprep.subr.bf16.mxu0 0
      %590 = vmatpush1.bf16.msra.mxu0 0
      %591 = vmatprep.subr.bf16.mxu0 0
      %592 = vmatpush1.bf16.msra.mxu0 0
      %593 = vmatprep.subr.bf16.mxu0 0
      %594 = vmatpush1.bf16.msra.mxu0 0
      %595 = vmatprep.subr.bf16.mxu0 0
      %596 = vmatpush1.bf16.msra.mxu0 0
      %597 = vmatprep.subr.bf16.mxu0 0
      %598 = vmatpush1.bf16.msra.mxu0 0
      %599 = vmatprep.subr.bf16.mxu0 0
      %600 = vmatpush1.bf16.msra.mxu0 0
      %601 = vmatprep.mubr.bf16.mxu0 0
      %602 = vmatmul.mubr.bf16.gmra.mrb[0].mxu0 %v565
      %v603 = vpop.f32.mrb[0].mxu0
      %v604 = vadd.f32 0.0, %v603
      %v605 = vpop.f32.mrb[0].mxu0
      %v606 = vadd.f32 0.0, %v605
      %v607 = vpop.f32.mrb[0].mxu0
      %v608 = vadd.f32 0.0, %v607
      %v609 = vpop.f32.mrb[0].mxu0
      %v610 = vadd.f32 0.0, %v609
      %611 = vmatprep.mubr.bf16.mxu0 0
      %612 = vmatmul.mubr.bf16.gmra.mrb[0].mxu0 %v566
      %v613 = vpop.f32.mrb[0].mxu0
      %v614 = vadd.f32 0.0, %v613
      %v615 = vpop.f32.mrb[0].mxu0
      %v616 = vadd.f32 0.0, %v615
      %v617 = vpop.f32.mrb[0].mxu0
      %v618 = vpop.f32.mrb[0].mxu0
      %619 = vdwg.mxu0
      %620 = vmatprep.subr.bf16.mxu0 %v518
      %621 = vmatpush1.bf16.msra.mxu0 %v517
      %622 = vmatprep.subr.bf16.mxu0 %v522
      %623 = vmatpush1.bf16.msra.mxu0 %v521
      %624 = vmatprep.subr.bf16.mxu0 %v526
      %625 = vmatpush1.bf16.msra.mxu0 %v525
      %626 = vmatprep.subr.bf16.mxu0 %v530
      %627 = vmatpush1.bf16.msra.mxu0 %v529
      %628 = vmatprep.subr.bf16.mxu0 %v534
      %629 = vmatpush1.bf16.msra.mxu0 %v533
      %630 = vmatprep.subr.bf16.mxu0 %v538
      %631 = vmatpush1.bf16.msra.mxu0 %v537
      %632 = vmatprep.subr.bf16.mxu0 %v542
      %633 = vmatpush1.bf16.msra.mxu0 %v541
      %634 = vmatprep.subr.bf16.mxu0 %v546
      %635 = vmatpush1.bf16.msra.mxu0 %v545
      %636 = vmatprep.subr.bf16.mxu0 0
      %637 = vmatpush1.bf16.msra.mxu0 0
      %638 = vmatprep.subr.bf16.mxu0 0
      %639 = vmatpush1.bf16.msra.mxu0 0
      %640 = vmatprep.subr.bf16.mxu0 0
      %641 = vmatpush1.bf16.msra.mxu0 0
      %642 = vmatprep.subr.bf16.mxu0 0
      %643 = vmatpush1.bf16.msra.mxu0 0
      %644 = vmatprep.subr.bf16.mxu0 0
      %645 = vmatpush1.bf16.msra.mxu0 0
      %646 = vmatprep.subr.bf16.mxu0 0
      %647 = vmatpush1.bf16.msra.mxu0 0
      %648 = vmatprep.subr.bf16.mxu0 0
      %649 = vmatpush1.bf16.msra.mxu0 0
      %650 = vmatprep.subr.bf16.mxu0 0
      %651 = vmatpush1.bf16.msra.mxu0 0
      %652 = vmatprep.mubr.bf16.mxu0 0
      %653 = vmatmul.mubr.bf16.gmra.mrb[0].mxu0 %v565
      %v654 = vpop.f32.mrb[0].mxu0
      %v655 = vadd.f32 0.0, %v654
      %v656 = vpop.f32.mrb[0].mxu0
      %v657 = vadd.f32 0.0, %v656
      %v658 = vpop.f32.mrb[0].mxu0
      %v659 = vadd.f32 0.0, %v658
      %v660 = vpop.f32.mrb[0].mxu0
      %v661 = vadd.f32 0.0, %v660
      %662 = vmatprep.mubr.bf16.mxu0 0
      %663 = vmatmul.mubr.bf16.gmra.mrb[0].mxu0 %v566
      %v664 = vpop.f32.mrb[0].mxu0
      %v665 = vadd.f32 0.0, %v664
      %v666 = vpop.f32.mrb[0].mxu0
      %v667 = vadd.f32 0.0, %v666
      %v668 = vpop.f32.mrb[0].mxu0
      %v669 = vpop.f32.mrb[0].mxu0
      %670 = vdwg.mxu0
      %v671 = vadd.f32 %v547, %v604
      %v672 = vadd.f32 %v548, %v606
      %v673 = vadd.f32 %v549, %v655
      %v674 = vadd.f32 %v550, %v657
      %v675 = vadd.f32 %v551, %v608
      %v676 = vadd.f32 %v552, %v610
      %v677 = vadd.f32 %v553, %v659
      %v678 = vadd.f32 %v554, %v661
      %v679 = vadd.f32 %v555, %v614
      %v680 = vadd.f32 %v556, %v616
      %v681 = vadd.f32 %v557, %v665
      %v682 = vadd.f32 %v558, %v667
      %683 = vst [vmem:[%s233] sm:$0xff] %v671
      %684 = vst [vmem:[%s233 + $0x8] sm:$0xff] %v672
      %685 = vst [vmem:[%s233 + $0x10] sm:$0xff] %v673
      %686 = vst [vmem:[%s233 + $0x18] sm:$0xff] %v674
      %687 = vst [vmem:[%s233 + $0x20] sm:$0xff] %v675
      %688 = vst [vmem:[%s233 + $0x28] sm:$0xff] %v676
      %689 = vst [vmem:[%s233 + $0x30] sm:$0xff] %v677
      %690 = vst [vmem:[%s233 + $0x38] sm:$0xff] %v678
      %691 = vst [vmem:[%s233 + $0x40] sm:$0x1] %v679
      %692 = vst [vmem:[%s233 + $0x48] sm:$0x1] %v680
      %693 = vst [vmem:[%s233 + $0x50] sm:$0x1] %v681
      %694 = vst [vmem:[%s233 + $0x58] sm:$0x1] %v682
      %p695 = scmp.lt.s32.totalorder %s18, 1
      %s696 = scalar_select %p695, %s18, 1
      %p697 = scmp.lt.s32.totalorder %s19, 0
      %s698 = scalar_select %p697, %s19, 0
      %s699 = smul.addr %s698, 12
      %s700 = smul.addr %s696, 12
      %s701 = sadd.s32 %s699, %s700
      %s702 = smul.addr %s701, 8
      %s703 = scalar_lea.vmem %s2, %s702
      // Predicated region
      $region33: #{tpu_custom_call.1} parent=27 // pred_check
        %p704 = pneg %p112
      $region34: #{tpu_custom_call.1} parent=27 // pred_check_branch
        %706 = sbr.rel (%p704) target = $region36
      $region35: #{tpu_custom_call.1} parent=27 // pred_region
        _
      $region36: #{tpu_custom_call.1} parent=27 // pred_fallthru
        _
    $region28: #{tpu_custom_call.1} parent=5 // pred_fallthru
      _
    %p707 = scmp.le.s32.totalorder 2, %s8
    // Predicated region
    $region37: #{tpu_custom_call.1} parent=5 // pred_check
      %p708 = pneg %p707
    $region38: #{tpu_custom_call.1} parent=5 // pred_check_branch
      %710 = sbr.rel (%p708) target = $region40
    $region39: #{tpu_custom_call.1} parent=5 // pred_region
      %s711 = ssub.s32 %s8, 2
      // Predicated region
      $region41: #{tpu_custom_call.1} parent=39 // pred_check
        %p712 = pneg %p118
      $region42: #{tpu_custom_call.1} parent=39 // pred_check_branch
        %714 = sbr.rel (%p712) target = $region44
      $region43: #{tpu_custom_call.1} parent=39 // pred_region
        %p715 = scmp.lt.s32.totalorder %s21, 1
        %s716 = scalar_select %p715, %s21, 1
        %p717 = scmp.lt.s32.totalorder %s22, 0
        %s718 = scalar_select %p717, %s22, 0
        %s719 = smul.addr %s718, 12
        %s720 = smul.addr %s716, 12
        %s721 = sadd.s32 %s719, %s720
        %s722 = smul.addr %s721, 8
        %s723 = scalar_lea.vmem %s2, %s722
      $region44: #{tpu_custom_call.1} parent=39 // pred_fallthru
        _
    $region40: #{tpu_custom_call.1} parent=5 // pred_fallthru
      _
  $region6: #{tpu_custom_call.1} parent=0 // loop_footer
    %s12 = sadd.s32 1, %s8
  $region7: #{tpu_custom_call.1} parent=0 // loop_footer_branch
    %7 = sbr.rel target = $region3
  $region8: #{tpu_custom_call.1} parent=0 // loop_exit
    _

</llo_original>
